<compile_context>
chip_gen: v7x
topology: tpu7x:2x2x1
jax: 0.10.0
libtpu: 0.0.40
codegen_flags: <defaults>
</compile_context>

<pallas_src>
import functools
import math

import jax
import jax.numpy as jnp
from jax import lax
from jax.experimental import pallas as pl
from jax.experimental.pallas import tpu as pltpu


def _round_up(a, m):
    return ((a + m - 1) // m) * m


def _device_kind():
    try:
        return jax.devices()[0].device_kind.lower()
    except Exception:
        return ""


# --------------------------------------------------------------------------- #
# Kernel 1: bf16 projection on the MXU + lane-dense attention logits.
# --------------------------------------------------------------------------- #
def _feat_kernel(x_ref, w_ref, b_ref, att_ref, feat_ref, epre_ref, *, ones_col):
    # x_ref: [tq, C_in] bf16, w_ref: [C_in, Fp] bf16, b_ref: [1, Fp] f32, att_ref: [Fp, 2] f32
    feat = jnp.dot(x_ref[...], w_ref[...],
                   preferred_element_type=jnp.float32) + b_ref[...]
    # Column `ones_col` = 1.0: the aggregation matmul produces the softmax denominator in
    # that output column for free (att row `ones_col` is zero, so e_pre is unaffected).
    col = lax.broadcasted_iota(jnp.int32, feat.shape, 1)
    feat = jnp.where(col == ones_col, 1.0, feat)
    feat_ref[...] = feat.astype(feat_ref.dtype)          # bf16 for the MXU aggregation
    # e_pre emitted transposed [2, tq] (lane-dense store, no width-2 vst.msk):
    # contract att dim 0 with feat dim 1 -> [2, tq].
    epre_ref[...] = lax.dot_general(
        att_ref[...], feat,
        dimension_numbers=(((0,), (1,)), ((), ())),
        preferred_element_type=jnp.float32)


# --------------------------------------------------------------------------- #
# Kernel 2: tiled online-softmax GAT aggregation (denominator fused into the MXU).
# --------------------------------------------------------------------------- #
def _agg_kernel(e_t_ref, e_s_ref, adj_ref, feat_ref, out_ref,
                m_sc, acc_sc, *, negative_slope, ts, feat_resident,
                denom_col, bf16_exp):
    # e_t_ref: [tq, 1]  f32  target-side logit part for this row tile
    # e_s_ref: [1, ts]  f32  source-side logit part for this column tile
    # adj_ref: [tq, ts] int8 edge counts (self edge already on the diagonal)
    # feat_ref:[ts,Fp] / [Np,Fp] bf16 projected source features (+ ones column)
    # out_ref: [tq, Fp] f32  output (resident across the source axis)
    j = pl.program_id(1)

    @pl.when(j == 0)
    def _():
        m_sc[...] = jnp.full_like(m_sc, -jnp.inf)
        acc_sc[...] = jnp.zeros_like(acc_sc)

    s = e_t_ref[...] + e_s_ref[...]                               # [tq, ts] outer sum
    s = jnp.where(s > 0, s, negative_slope * s)                   # LeakyReLU (f32, VPU)

    m_prev = m_sc[...]
    m_new = jnp.maximum(m_prev, jnp.max(s, axis=1, keepdims=True))  # unmasked max is a
    rescale = jnp.exp(m_prev - m_new)                               # valid softmax shift

    cnt = adj_ref[...]                                            # int8 counts
    if bf16_exp:
        # v6e / v7x: bf16-capable EUP/VPU — exp and weighting in bf16.
        p = cnt.astype(jnp.bfloat16) * jnp.exp((s - m_new).astype(jnp.bfloat16))
    else:
        # v5e and older: no bf16 EUP — keep the exp in f32, cast only for the MXU.
        p = (cnt.astype(jnp.float32) * jnp.exp(s - m_new)).astype(jnp.bfloat16)

    if feat_resident:
        start = pl.multiple_of(j * ts, ts)
        feat = feat_ref[pl.ds(start, ts), :]                      # VMEM-resident slice
    else:
        feat = feat_ref[...]

    # feat column `denom_col` is all ones, so that column of the matmul is sum_k p[:, k]
    # — the softmax denominator — i.e. no separate cross-lane row-sum on the XLU.
    acc_sc[...] = rescale * acc_sc[...] + jnp.dot(
        p, feat, preferred_element_type=jnp.float32)
    m_sc[...] = m_new

    @pl.when(j == pl.num_programs(1) - 1)
    def _():
        inv_l = pl.reciprocal(acc_sc[:, denom_col:denom_col + 1], approx=True)  # EUP
        out_ref[...] = (acc_sc[...] * inv_l).astype(out_ref.dtype)


# --------------------------------------------------------------------------- #
# Wrapper: index prep, padding, tile sizing, two pallas_calls.
# --------------------------------------------------------------------------- #
def gas_gat_conv(x, edge_index, params, *, heads, out_channels,
                 negative_slope=0.2, concat=True, flow="target_to_source",
                 tq=512, ts=2048, vmem_limit_bytes=None):
    n, c_in = x.shape
    f = heads * out_channels
    f_pad = _round_up(f + 1, 128)        # +1 ones column, padded lane-dense
    ones_col = f

    tid, sid = (0, 1) if flow == "target_to_source" else (1, 0)
    src = edge_index[sid].astype(jnp.int32)
    tar = edge_index[tid].astype(jnp.int32)

    # Power-of-two tiles >= 128 so every block is lane/sublane aligned (int8/bf16/f32)
    # and one padded size Np is a common multiple of both.
    np2 = pl.next_power_of_2(max(n, 1))
    tq = max(128, min(pl.next_power_of_2(tq), np2))
    ts = max(128, min(pl.next_power_of_2(ts), np2))
    n_p = _round_up(n, max(tq, ts))

    kind = _device_kind()
    bf16_exp = not any(v in kind for v in ("v2", "v3", "v4", "v5"))
    if vmem_limit_bytes is None:
        # v5e/v6e have 128 MiB physical VMEM; v7x only 64 MiB per TensorCore.
        vmem_limit_bytes = (64 if ("v5" in kind or "v6" in kind) else 40) * 1024 * 1024

    # Dense edge-count matrix (rows = target, cols = source).  Self edges are folded
    # into the SAME scatter (no dense eye materialization) and the result is cast to
    # int8 immediately — 1 byte/element for the dominant HBM stream in the agg kernel.
    diag = jnp.arange(n, dtype=jnp.int32)
    rows = jnp.concatenate([tar, diag])
    cols = jnp.concatenate([src, diag])
    adj = jnp.zeros((n_p, n_p), jnp.float32).at[rows, cols].add(1.0)
    adj = adj.astype(jnp.int8)

    # bf16 MXU operands (f32 accumulation in-kernel); weight/bias/att zero-padded to Fp.
    x_p = jnp.zeros((n_p, c_in), jnp.bfloat16).at[:n].set(x.astype(jnp.bfloat16))
    w = jnp.zeros((c_in, f_pad), jnp.bfloat16).at[:, :f].set(
        params["weight"].astype(jnp.bfloat16))                     # [C_in, Fp]
    b = jnp.zeros((1, f_pad), jnp.float32).at[:, :f].set(
        params["bias"].reshape(1, f).astype(jnp.float32))          # [1, Fp]
    att = jnp.zeros((f_pad, 2), jnp.float32).at[:f].set(
        params["att"].astype(jnp.float32))                         # [Fp, 2]

    # ---- kernel 1: feat (bf16, ones column) + transposed e_pre (f32), computed once ----
    feat_bf, e_pre_t = pl.pallas_call(
        functools.partial(_feat_kernel, ones_col=ones_col),
        out_shape=(jax.ShapeDtypeStruct((n_p, f_pad), jnp.bfloat16),
                   jax.ShapeDtypeStruct((2, n_p), jnp.float32)),
        grid_spec=pltpu.PrefetchScalarGridSpec(
            num_scalar_prefetch=0, grid=(n_p // tq,),
            in_specs=[pl.BlockSpec((tq, c_in), lambda i: (i, 0)),
                      pl.BlockSpec((c_in, f_pad), lambda i: (0, 0)),
                      pl.BlockSpec((1, f_pad), lambda i: (0, 0)),
                      pl.BlockSpec((f_pad, 2), lambda i: (0, 0))],
            out_specs=[pl.BlockSpec((tq, f_pad), lambda i: (i, 0)),
                       pl.BlockSpec((2, tq), lambda i: (0, i))]),
        compiler_params=pltpu.CompilerParams(
            dimension_semantics=("parallel",),
            vmem_limit_bytes=vmem_limit_bytes),
    )(x_p, w, b, att)

    e_t = e_pre_t[0].reshape(n_p, 1)      # [Np, 1] target-side logit part
    e_s = e_pre_t[1:2, :]                 # [1, Np] source-side logit part (no transpose)

    # Keep feat fully VMEM-resident across the whole aggregation when it is small
    # (avoids re-streaming a (ts, Fp) tile for every row tile); otherwise stream tiles.
    feat_resident = n_p * f_pad * 2 <= 4 * 1024 * 1024
    feat_spec = (pl.BlockSpec((n_p, f_pad), lambda i, j: (0, 0)) if feat_resident
                 else pl.BlockSpec((ts, f_pad), lambda i, j: (j, 0)))

    # ---- kernel 2: tiled online-softmax aggregation ----
    kernel = functools.partial(_agg_kernel, negative_slope=negative_slope, ts=ts,
                               feat_resident=feat_resident, denom_col=ones_col,
                               bf16_exp=bf16_exp)
    out = pl.pallas_call(
        kernel,
        out_shape=jax.ShapeDtypeStruct((n_p, f_pad), jnp.float32),
        grid_spec=pltpu.PrefetchScalarGridSpec(
            num_scalar_prefetch=0, grid=(n_p // tq, n_p // ts),
            in_specs=[pl.BlockSpec((tq, 1), lambda i, j: (i, 0)),
                      pl.BlockSpec((1, ts), lambda i, j: (0, j)),
                      pl.BlockSpec((tq, ts), lambda i, j: (i, j)),
                      feat_spec],
            out_specs=pl.BlockSpec((tq, f_pad), lambda i, j: (i, 0)),
            scratch_shapes=[pltpu.VMEM((tq, 1), jnp.float32),        # running max
                            pltpu.VMEM((tq, f_pad), jnp.float32)]),  # acc (+denom column)
        compiler_params=pltpu.CompilerParams(
            dimension_semantics=("parallel", "arbitrary"),
            vmem_limit_bytes=vmem_limit_bytes),
    )(e_t, e_s, adj, feat_bf)

    out = out[:n, :f]
    if not concat:
        out = out.reshape(n, heads, out_channels).mean(axis=1)
    return out


# --------------------------------------------------------------------------- #
# Pure-JAX edge-list reference (gather / segment softmax / scatter-add).
# --------------------------------------------------------------------------- #
def _reference(x, edge_index, params, *, heads, out_channels,
               negative_slope=0.2, concat=True, flow="target_to_source"):
    n = x.shape[0]
    f = heads * out_channels
    tid, sid = (0, 1) if flow == "target_to_source" else (1, 0)
    src = edge_index[sid].astype(jnp.int32)
    tar = edge_index[tid].astype(jnp.int32)

    feat = x @ params["weight"] + params["bias"][None, :]
    e_pre = feat @ params["att"]                  # [N, 2]
    e_t, e_s = e_pre[:, 0], e_pre[:, 1]

    def lrelu(v):
        return jnp.where(v > 0, v, negative_slope * v)

    e_edge = lrelu(e_t[tar] + e_s[src])
    e_self = lrelu(e_t + e_s)
    mx = jnp.full((n,), -jnp.inf, jnp.float32).at[tar].max(e_edge)
    mx = jnp.maximum(mx, e_self)
    p_edge = jnp.exp(e_edge - mx[tar])
    p_self = jnp.exp(e_self - mx)
    denom = p_self + jnp.zeros((n,), jnp.float32).at[tar].add(p_edge)
    alpha = p_edge / denom[tar]
    alpha_self = p_self / denom
    out = alpha_self[:, None] * feat + \
        jnp.zeros((n, f), jnp.float32).at[tar].add(alpha[:, None] * feat[src])
    if not concat:
        out = out.reshape(n, heads, out_channels).mean(axis=1)
    return out


def _init_params(key, in_channels, out_channels, heads):
    """Deterministic glorot init matching the torch module's parameter shapes."""
    f = heads * out_channels
    k_w, k_b, k_a = jax.random.split(key, 3)
    stdv_w = math.sqrt(6.0 / (f + in_channels))          # glorot on [F, C_in] torch weight
    w_torch = jax.random.uniform(k_w, (f, in_channels), jnp.float32, -stdv_w, stdv_w)
    bound_b = 1.0 / math.sqrt(in_channels)               # torch Linear default bias init
    b = jax.random.uniform(k_b, (f,), jnp.float32, -bound_b, bound_b)
    stdv_a = math.sqrt(6.0 / (f + 2))                    # glorot on att [F, 2]
    att = jax.random.uniform(k_a, (f, 2), jnp.float32, -stdv_a, stdv_a)
    return {"weight": w_torch.T, "bias": b, "att": att}  # weight stored as [C_in, F]


if __name__ == "__main__":
    N, C_IN, HEADS, C_OUT, E = 64, 16, 4, 8, 256

    key = jax.random.PRNGKey(0)
    k_x, k_e, k_p = jax.random.split(key, 3)
    x = jax.random.normal(k_x, (N, C_IN), jnp.float32)
    edge_index = jax.random.randint(k_e, (2, E), 0, N, jnp.int32)  # row0=target, row1=source
    params = _init_params(k_p, C_IN, C_OUT, HEADS)

    out = gas_gat_conv(x, edge_index, params, heads=HEADS, out_channels=C_OUT,
                       negative_slope=0.2, concat=True, flow="target_to_source")
    out = jax.block_until_ready(out)

    ref = _reference(x, edge_index, params, heads=HEADS, out_channels=C_OUT,
                     negative_slope=0.2, concat=True, flow="target_to_source")
    assert out.shape == (N, HEADS * C_OUT)
    # Tolerance reflects the bf16 MXU pipeline (bf16 x/W/feat/p, bf16 exp on v6e+,
    # approximate reciprocal) against the f32 reference.
    assert jnp.allclose(out, ref, atol=2.5e-2, rtol=2.5e-2), \
        float(jnp.max(jnp.abs(out - ref)))

    print("KERNEL_OK")
</pallas_src>

<mosaic_0001>
module attributes {stable_mosaic.version = 11 : i64} {
  func.func @_feat_kernel(%arg0: i32, %arg1: memref<128x16xbf16, #tpu.memory_space<vmem>>, %arg2: memref<16x128xbf16, #tpu.memory_space<vmem>>, %arg3: memref<1x128xf32, #tpu.memory_space<vmem>>, %arg4: memref<128x2xf32, #tpu.memory_space<vmem>>, %arg5: memref<128x128xbf16, #tpu.memory_space<vmem>>, %arg6: memref<2x128xf32, #tpu.memory_space<vmem>>) attributes {dimension_semantics = [#tpu.dimension_semantics<parallel>], iteration_bounds = array<i64: 1>, scalar_prefetch = 0 : i64, scratch_operands = 0 : i64, tpu.core_type = #tpu.core_type<tc>, window_params = [{transform_indices = @transform_0, window_bounds = array<i64: 128, 16>}, {pipeline_mode = #tpu.pipeline_mode<synchronous>, transform_indices = @transform_1, window_bounds = array<i64: 16, 128>}, {pipeline_mode = #tpu.pipeline_mode<synchronous>, transform_indices = @transform_2, window_bounds = array<i64: 1, 128>}, {pipeline_mode = #tpu.pipeline_mode<synchronous>, transform_indices = @transform_3, window_bounds = array<i64: 128, 2>}, {transform_indices = @transform_4, window_bounds = array<i64: 128, 128>}, {transform_indices = @transform_5, window_bounds = array<i64: 2, 128>}]} {
    %c0 = arith.constant 0 : index
    %c0_0 = arith.constant 0 : index
    %0 = vector.load %arg1[%c0, %c0_0] : memref<128x16xbf16, #tpu.memory_space<vmem>>, vector<128x16xbf16>
    %c0_1 = arith.constant 0 : index
    %c0_2 = arith.constant 0 : index
    %1 = vector.load %arg2[%c0_1, %c0_2] : memref<16x128xbf16, #tpu.memory_space<vmem>>, vector<16x128xbf16>
    %cst = arith.constant dense<0.000000e+00> : vector<128x128xf32>
    %2 = tpu.matmul %0, %1, %cst {dimension_numbers = #tpu.dot_dimension_numbers<[1], [0], [0], [1], [0, 0, 1, 1], [], []>} : vector<128x16xbf16>, vector<16x128xbf16>, vector<128x128xf32> -> vector<128x128xf32>
    %c0_3 = arith.constant 0 : index
    %c0_4 = arith.constant 0 : index
    %3 = vector.load %arg3[%c0_3, %c0_4] : memref<1x128xf32, #tpu.memory_space<vmem>>, vector<1x128xf32>
    %4 = vector.broadcast %3 : vector<1x128xf32> to vector<128x128xf32>
    %5 = arith.addf %2, %4 : vector<128x128xf32>
    %6 = tpu.iota {dimensions = array<i32: 1>} : vector<128x128xi32>
    %c32_i32 = arith.constant 32 : i32
    %7 = vector.broadcast %c32_i32 : i32 to vector<128x128xi32>
    %8 = arith.cmpi eq, %6, %7 : vector<128x128xi32>
    %cst_5 = arith.constant 1.000000e+00 : f32
    %9 = vector.broadcast %cst_5 : f32 to vector<128x128xf32>
    %10 = arith.select %8, %9, %5 : vector<128x128xi1>, vector<128x128xf32>
    %11 = arith.truncf %10 : vector<128x128xf32> to vector<128x128xbf16>
    %c0_6 = arith.constant 0 : index
    %c0_7 = arith.constant 0 : index
    %12 = vector.load %arg5[%c0_6, %c0_7] : memref<128x128xbf16, #tpu.memory_space<vmem>>, vector<128x128xbf16>
    tpu.vector_store %arg5[%c0_6, %c0_7], %11 {strides = array<i32>} : memref<128x128xbf16, #tpu.memory_space<vmem>>, vector<128x128xbf16>,
    %c0_8 = arith.constant 0 : index
    %c0_9 = arith.constant 0 : index
    %13 = vector.load %arg4[%c0_8, %c0_9] : memref<128x2xf32, #tpu.memory_space<vmem>>, vector<128x2xf32>
    %cst_10 = arith.constant dense<0.000000e+00> : vector<2x128xf32>
    %14 = tpu.matmul %13, %10, %cst_10 {dimension_numbers = #tpu.dot_dimension_numbers<[0], [1], [1], [0], [0, 1, 1, 0], [], []>} : vector<128x2xf32>, vector<128x128xf32>, vector<2x128xf32> -> vector<2x128xf32>
    %c0_11 = arith.constant 0 : index
    %c0_12 = arith.constant 0 : index
    %15 = vector.load %arg6[%c0_11, %c0_12] : memref<2x128xf32, #tpu.memory_space<vmem>>, vector<2x128xf32>
    tpu.vector_store %arg6[%c0_11, %c0_12], %14 {strides = array<i32>} : memref<2x128xf32, #tpu.memory_space<vmem>>, vector<2x128xf32>,
    return
  }
  func.func @transform_0(%arg0: i32) -> (i32, i32) {
    %c0_i32 = arith.constant 0 : i32
    %c0_i32_0 = arith.constant 0 : i32
    return %arg0, %c0_i32 : i32, i32
  }
  func.func @transform_1(%arg0: i32) -> (i32, i32) {
    %c0_i32 = arith.constant 0 : i32
    %c0_i32_0 = arith.constant 0 : i32
    %c0_i32_1 = arith.constant 0 : i32
    return %c0_i32, %c0_i32_0 : i32, i32
  }
  func.func @transform_2(%arg0: i32) -> (i32, i32) {
    %c0_i32 = arith.constant 0 : i32
    %c0_i32_0 = arith.constant 0 : i32
    %c0_i32_1 = arith.constant 0 : i32
    return %c0_i32, %c0_i32_0 : i32, i32
  }
  func.func @transform_3(%arg0: i32) -> (i32, i32) {
    %c0_i32 = arith.constant 0 : i32
    %c0_i32_0 = arith.constant 0 : i32
    %c0_i32_1 = arith.constant 0 : i32
    return %c0_i32, %c0_i32_0 : i32, i32
  }
  func.func @transform_4(%arg0: i32) -> (i32, i32) {
    %c0_i32 = arith.constant 0 : i32
    %c0_i32_0 = arith.constant 0 : i32
    return %arg0, %c0_i32 : i32, i32
  }
  func.func @transform_5(%arg0: i32) -> (i32, i32) {
    %c0_i32 = arith.constant 0 : i32
    %c0_i32_0 = arith.constant 0 : i32
    return %c0_i32, %arg0 : i32, i32
  }
}

</mosaic_0001>

<llo_original>
// kernel: tpu_custom_call.1
$region0: #{tpu_custom_call.1}
  #allocation0 [shape = 'u32[]', space=smem, size = 0x4, offset = 0x4, fixed_abs, tag = 'smem constant byte address 0x4 - core index']
  #allocation1 [shape = 'u32[144,128]{1,0:T(1,128)}', space=vmem, size = 0x12000, scoped, tag = 'internal scratch']
  %s0 = inlined_call_operand.vmem [shape: bf16[128,16], index: 0, kind: input, shape index: {}]
  %s1 = inlined_call_operand.vmem [shape: bf16[16,128], index: 1, kind: input, shape index: {}]
  %s2 = inlined_call_operand.vmem [shape: f32[1,128], index: 2, kind: input, shape index: {}]
  %s3 = inlined_call_operand.vmem [shape: f32[128,2], index: 3, kind: input, shape index: {}]
  %s4 = inlined_call_operand.hbm [shape: bf16[128,128], index: 4, kind: output, shape index: {0}]
  %s5 = inlined_call_operand.hbm [shape: f32[2,128], index: 5, kind: output, shape index: {1}]
  %6 = xla_tuple %s4, %s5
  %s7 = sld [smem:[#allocation0]]
  $region34: #{tpu_custom_call.1} parent=0
    _
  %s9 = ssub.s32 1, %s7
  %s10 = scalar_select 0, %s9, %s7
  $region1: #{tpu_custom_call.1} parent=0
    #allocation2 [shape = 'u8[32768]{0}', space=vmem, size = 0x8000, scoped, tag = 'output window, operand 0, single buffered']
    #allocation3 [shape = 's32[1]{0}', space=sflag, size = 0x4, scoped, tag = 'scoped memory for tpu_custom_call.1']
    #allocation4 [shape = 'u8[1024]{0}', space=vmem, size = 0x400, scoped, tag = 'output window, operand 1, single buffered']
    #allocation5 [shape = 's32[1]{0}', space=sflag, size = 0x4, scoped, tag = 'scoped memory for tpu_custom_call.1']
    %11 = vsyncpa [#allocation3], 0
    %12 = vsyncpa [#allocation5], 0
    // Predicated region
    $region2: #{tpu_custom_call.1} parent=1 // pred_check
      _
    $region3: #{tpu_custom_call.1} parent=1 // pred_check_branch
      %14 = sbr.rel (0) target = $region5
    $region4: #{tpu_custom_call.1} parent=1 // pred_region
      _
    $region5: #{tpu_custom_call.1} parent=1 // pred_fallthru
      _
    // Predicated region
    $region6: #{tpu_custom_call.1} parent=1 // pred_check
      _
    $region7: #{tpu_custom_call.1} parent=1 // pred_check_branch
      %16 = sbr.rel (0) target = $region9
    $region8: #{tpu_custom_call.1} parent=1 // pred_region
      _
    $region9: #{tpu_custom_call.1} parent=1 // pred_fallthru
      _
    // Predicated region
    $region10: #{tpu_custom_call.1} parent=1 // pred_check
      _
    $region11: #{tpu_custom_call.1} parent=1 // pred_check_branch
      %18 = sbr.rel (0) target = $region13
    $region12: #{tpu_custom_call.1} parent=1 // pred_region
      _
    $region13: #{tpu_custom_call.1} parent=1 // pred_fallthru
      _
    // Predicated region
    $region14: #{tpu_custom_call.1} parent=1 // pred_check
      _
    $region15: #{tpu_custom_call.1} parent=1 // pred_check_branch
      %20 = sbr.rel (0) target = $region17
    $region16: #{tpu_custom_call.1} parent=1 // pred_region
      _
    $region17: #{tpu_custom_call.1} parent=1 // pred_fallthru
      _
    %v22 = vld [vmem:[%s0] sm:$0xf]
    %v23 = vld [vmem:[%s0 + $0x4] sm:$0xf]
    %v24 = vld [vmem:[%s0 + $0x8] sm:$0xf]
    %v25 = vld [vmem:[%s0 + $0xc] sm:$0xf]
    %v26 = vld [vmem:[%s0 + $0x10] sm:$0xf]
    %v27 = vld [vmem:[%s0 + $0x14] sm:$0xf]
    %v28 = vld [vmem:[%s0 + $0x18] sm:$0xf]
    %v29 = vld [vmem:[%s0 + $0x1c] sm:$0xf]
    %v30 = vld [vmem:[%s0 + $0x20] sm:$0xf]
    %v31 = vld [vmem:[%s0 + $0x24] sm:$0xf]
    %v32 = vld [vmem:[%s0 + $0x28] sm:$0xf]
    %v33 = vld [vmem:[%s0 + $0x2c] sm:$0xf]
    %v34 = vld [vmem:[%s0 + $0x30] sm:$0xf]
    %v35 = vld [vmem:[%s0 + $0x34] sm:$0xf]
    %v36 = vld [vmem:[%s0 + $0x38] sm:$0xf]
    %v37 = vld [vmem:[%s0 + $0x3c] sm:$0xf]
    %v38 = vld [vmem:[%s1] sm:$0xf]
    %v39 = vld [vmem:[%s1 + $0x4] sm:$0xf]
    %v40 = vld [vmem:[%s2] sm:$0x1]
    %v42 = vlaneseq
    %v43 = vshrl.u32 %v42, 7
    %v44 = vsub.s32 0, %v43
    %v45 = vrot.slane %v40, %v44
    %v63 = vunpack.c.l.b16 %v22
    %v64 = vunpack.c.l.b16 %v23
    %v65 = vunpack.c.l.b16 %v24
    %v66 = vunpack.c.l.b16 %v25
    %v67 = vunpack.c.l.b16 %v26
    %v68 = vunpack.c.l.b16 %v27
    %v69 = vunpack.c.l.b16 %v28
    %v70 = vunpack.c.l.b16 %v29
    %v71 = vunpack.c.l.b16 %v30
    %v72 = vunpack.c.l.b16 %v31
    %v73 = vunpack.c.l.b16 %v32
    %v74 = vunpack.c.l.b16 %v33
    %v75 = vunpack.c.l.b16 %v34
    %v76 = vunpack.c.l.b16 %v35
    %v77 = vunpack.c.l.b16 %v36
    %v78 = vunpack.c.l.b16 %v37
    %v79 = vpack.c.b16 %v64, %v63
    %v80 = vpack.c.b16 %v66, %v65
    %v81 = vpack.c.b16 %v68, %v67
    %v82 = vpack.c.b16 %v70, %v69
    %v83 = vpack.c.b16 %v72, %v71
    %v84 = vpack.c.b16 %v74, %v73
    %v85 = vpack.c.b16 %v76, %v75
    %v86 = vpack.c.b16 %v78, %v77
    %v89 = vunpack.c.l.b16 %v38
    %v90 = vunpack.c.l.b16 %v39
    %v91 = vpack.c.b16 %v90, %v89
    %vm93 = vcmask 130048
    %v95 = vsel %vm93, %v79, 0
    %v98 = vsel %vm93, %v80, 0
    %v101 = vsel %vm93, %v81, 0
    %v104 = vsel %vm93, %v82, 0
    %v107 = vsel %vm93, %v83, 0
    %v110 = vsel %vm93, %v84, 0
    %v113 = vsel %vm93, %v85, 0
    %v116 = vsel %vm93, %v86, 0
    %118 = vmatprep.subr.bf16.mxu0 0
    %119 = vmatpush1.bf16.msra.mxu0 %v91
    %120 = vmatprep.subr.bf16.mxu0 0
    %121 = vmatpush1.bf16.msra.mxu0 0
    %122 = vmatprep.subr.bf16.mxu0 0
    %123 = vmatpush1.bf16.msra.mxu0 0
    %124 = vmatprep.subr.bf16.mxu0 0
    %125 = vmatpush1.bf16.msra.mxu0 0
    %126 = vmatprep.subr.bf16.mxu0 0
    %127 = vmatpush1.bf16.msra.mxu0 0
    %128 = vmatprep.subr.bf16.mxu0 0
    %129 = vmatpush1.bf16.msra.mxu0 0
    %130 = vmatprep.subr.bf16.mxu0 0
    %131 = vmatpush1.bf16.msra.mxu0 0
    %132 = vmatprep.subr.bf16.mxu0 0
    %133 = vmatpush1.bf16.msra.mxu0 0
    %134 = vmatprep.subr.bf16.mxu0 0
    %135 = vmatpush1.bf16.msra.mxu0 0
    %136 = vmatprep.subr.bf16.mxu0 0
    %137 = vmatpush1.bf16.msra.mxu0 0
    %138 = vmatprep.subr.bf16.mxu0 0
    %139 = vmatpush1.bf16.msra.mxu0 0
    %140 = vmatprep.subr.bf16.mxu0 0
    %141 = vmatpush1.bf16.msra.mxu0 0
    %142 = vmatprep.subr.bf16.mxu0 0
    %143 = vmatpush1.bf16.msra.mxu0 0
    %144 = vmatprep.subr.bf16.mxu0 0
    %145 = vmatpush1.bf16.msra.mxu0 0
    %146 = vmatprep.subr.bf16.mxu0 0
    %147 = vmatpush1.bf16.msra.mxu0 0
    %148 = vmatprep.subr.bf16.mxu0 0
    %149 = vmatpush1.bf16.msra.mxu0 0
    %150 = vmatprep.mubr.bf16.mxu0 0
    %151 = vmatmul.mubr.bf16.gmra.mrb[0].mxu0 %v95
    %v152 = vpop.f32.mrb[0].mxu0
    %v153 = vadd.f32 %v45, %v152
    %v154 = vpop.f32.mrb[0].mxu0
    %v155 = vpop.f32.mrb[0].mxu0
    %v156 = vadd.f32 %v45, %v155
    %v157 = vpop.f32.mrb[0].mxu0
    %158 = vmatprep.mubr.bf16.mxu0 0
    %159 = vmatmul.mubr.bf16.gmra.mrb[0].mxu0 %v98
    %v160 = vpop.f32.mrb[0].mxu0
    %v161 = vadd.f32 %v45, %v160
    %v162 = vpop.f32.mrb[0].mxu0
    %v163 = vpop.f32.mrb[0].mxu0
    %v164 = vadd.f32 %v45, %v163
    %v165 = vpop.f32.mrb[0].mxu0
    %166 = vmatprep.mubr.bf16.mxu0 0
    %167 = vmatmul.mubr.bf16.gmra.mrb[0].mxu0 %v101
    %v168 = vpop.f32.mrb[0].mxu0
    %v169 = vadd.f32 %v45, %v168
    %v170 = vpop.f32.mrb[0].mxu0
    %v171 = vpop.f32.mrb[0].mxu0
    %v172 = vadd.f32 %v45, %v171
    %v173 = vpop.f32.mrb[0].mxu0
    %174 = vmatprep.mubr.bf16.mxu0 0
    %175 = vmatmul.mubr.bf16.gmra.mrb[0].mxu0 %v104
    %v176 = vpop.f32.mrb[0].mxu0
    %v177 = vadd.f32 %v45, %v176
    %v178 = vpop.f32.mrb[0].mxu0
    %v179 = vpop.f32.mrb[0].mxu0
    %v180 = vadd.f32 %v45, %v179
    %v181 = vpop.f32.mrb[0].mxu0
    %182 = vmatprep.mubr.bf16.mxu0 0
    %183 = vmatmul.mubr.bf16.gmra.mrb[0].mxu0 %v107
    %v184 = vpop.f32.mrb[0].mxu0
    %v185 = vadd.f32 %v45, %v184
    %v186 = vpop.f32.mrb[0].mxu0
    %v187 = vpop.f32.mrb[0].mxu0
    %v188 = vadd.f32 %v45, %v187
    %v189 = vpop.f32.mrb[0].mxu0
    %190 = vmatprep.mubr.bf16.mxu0 0
    %191 = vmatmul.mubr.bf16.gmra.mrb[0].mxu0 %v110
    %v192 = vpop.f32.mrb[0].mxu0
    %v193 = vadd.f32 %v45, %v192
    %v194 = vpop.f32.mrb[0].mxu0
    %v195 = vpop.f32.mrb[0].mxu0
    %v196 = vadd.f32 %v45, %v195
    %v197 = vpop.f32.mrb[0].mxu0
    %198 = vmatprep.mubr.bf16.mxu0 0
    %199 = vmatmul.mubr.bf16.gmra.mrb[0].mxu0 %v113
    %v200 = vpop.f32.mrb[0].mxu0
    %v201 = vadd.f32 %v45, %v200
    %v202 = vpop.f32.mrb[0].mxu0
    %v203 = vpop.f32.mrb[0].mxu0
    %v204 = vadd.f32 %v45, %v203
    %v205 = vpop.f32.mrb[0].mxu0
    %206 = vmatprep.mubr.bf16.mxu0 0
    %207 = vmatmul.mubr.bf16.gmra.mrb[0].mxu0 %v116
    %v208 = vpop.f32.mrb[0].mxu0
    %v209 = vadd.f32 %v45, %v208
    %v210 = vpop.f32.mrb[0].mxu0
    %v211 = vpop.f32.mrb[0].mxu0
    %v212 = vadd.f32 %v45, %v211
    %v213 = vpop.f32.mrb[0].mxu0
    %214 = vdwg.mxu0
    %v215 = vlaneseq
    %v216 = vand.u32 %v215, 127
    %vm217 = vcmp.eq.s32.totalorder %v216, 32
    %v218 = vsel %vm217, 1.0, %v153
    %v219 = vsel %vm217, 1.0, %v156
    %v220 = vsel %vm217, 1.0, %v161
    %v221 = vsel %vm217, 1.0, %v164
    %v222 = vsel %vm217, 1.0, %v169
    %v223 = vsel %vm217, 1.0, %v172
    %v224 = vsel %vm217, 1.0, %v177
    %v225 = vsel %vm217, 1.0, %v180
    %v226 = vsel %vm217, 1.0, %v185
    %v227 = vsel %vm217, 1.0, %v188
    %v228 = vsel %vm217, 1.0, %v193
    %v229 = vsel %vm217, 1.0, %v196
    %v230 = vsel %vm217, 1.0, %v201
    %v231 = vsel %vm217, 1.0, %v204
    %v232 = vsel %vm217, 1.0, %v209
    %v233 = vsel %vm217, 1.0, %v212
    %v234 = vpack.c.bf16 %v219, %v218
    %v235 = vpack.c.bf16 %v221, %v220
    %v236 = vpack.c.bf16 %v223, %v222
    %v237 = vpack.c.bf16 %v225, %v224
    %v238 = vpack.c.bf16 %v227, %v226
    %v239 = vpack.c.bf16 %v229, %v228
    %v240 = vpack.c.bf16 %v231, %v230
    %v241 = vpack.c.bf16 %v233, %v232
    %v250 = vunpack.c.l.b16 %v234
    %v251 = vunpack.c.h.b16 %v234
    %v252 = vunpack.c.l.b16 %v235
    %v253 = vunpack.c.h.b16 %v235
    %v254 = vunpack.c.l.b16 %v236
    %v255 = vunpack.c.h.b16 %v236
    %v256 = vunpack.c.l.b16 %v237
    %v257 = vunpack.c.h.b16 %v237
    %v258 = vunpack.c.l.b16 %v238
    %v259 = vunpack.c.h.b16 %v238
    %v260 = vunpack.c.l.b16 %v239
    %v261 = vunpack.c.h.b16 %v239
    %v262 = vunpack.c.l.b16 %v240
    %v263 = vunpack.c.h.b16 %v240
    %v264 = vunpack.c.l.b16 %v241
    %v265 = vunpack.c.h.b16 %v241
    %v266 = vpack.c.b16 %v250, %v250
    %v267 = vpack.c.b16 %v251, %v251
    %v268 = vpack.c.b16 %v252, %v252
    %v269 = vpack.c.b16 %v253, %v253
    %v270 = vpack.c.b16 %v254, %v254
    %v271 = vpack.c.b16 %v255, %v255
    %v272 = vpack.c.b16 %v256, %v256
    %v273 = vpack.c.b16 %v257, %v257
    %v274 = vpack.c.b16 %v258, %v258
    %v275 = vpack.c.b16 %v259, %v259
    %v276 = vpack.c.b16 %v260, %v260
    %v277 = vpack.c.b16 %v261, %v261
    %v278 = vpack.c.b16 %v262, %v262
    %v279 = vpack.c.b16 %v263, %v263
    %v280 = vpack.c.b16 %v264, %v264
    %v281 = vpack.c.b16 %v265, %v265
    %298 = vst [vmem:[#allocation2] sm:$0xf] %v266
    %299 = vst [vmem:[#allocation2 + $0x4] sm:$0xf] %v267
    %300 = vst [vmem:[#allocation2 + $0x8] sm:$0xf] %v268
    %301 = vst [vmem:[#allocation2 + $0xc] sm:$0xf] %v269
    %302 = vst [vmem:[#allocation2 + $0x10] sm:$0xf] %v270
    %303 = vst [vmem:[#allocation2 + $0x14] sm:$0xf] %v271
    %304 = vst [vmem:[#allocation2 + $0x18] sm:$0xf] %v272
    %305 = vst [vmem:[#allocation2 + $0x1c] sm:$0xf] %v273
    %306 = vst [vmem:[#allocation2 + $0x20] sm:$0xf] %v274
    %307 = vst [vmem:[#allocation2 + $0x24] sm:$0xf] %v275
    %308 = vst [vmem:[#allocation2 + $0x28] sm:$0xf] %v276
    %309 = vst [vmem:[#allocation2 + $0x2c] sm:$0xf] %v277
    %310 = vst [vmem:[#allocation2 + $0x30] sm:$0xf] %v278
    %311 = vst [vmem:[#allocation2 + $0x34] sm:$0xf] %v279
    %312 = vst [vmem:[#allocation2 + $0x38] sm:$0xf] %v280
    %313 = vst [vmem:[#allocation2 + $0x3c] sm:$0xf] %v281
    %v314 = vld [vmem:[%s3] sm:$0xff]
    %v315 = vld [vmem:[%s3 + $0x8] sm:$0xff]
    %v316 = vld [vmem:[%s3 + $0x10] sm:$0xff]
    %v317 = vld [vmem:[%s3 + $0x18] sm:$0xff]
    %v318 = vld [vmem:[%s3 + $0x20] sm:$0xff]
    %v319 = vld [vmem:[%s3 + $0x28] sm:$0xff]
    %v320 = vld [vmem:[%s3 + $0x30] sm:$0xff]
    %v321 = vld [vmem:[%s3 + $0x38] sm:$0xff]
    %v322 = vld [vmem:[%s3 + $0x40] sm:$0xff]
    %v323 = vld [vmem:[%s3 + $0x48] sm:$0xff]
    %v324 = vld [vmem:[%s3 + $0x50] sm:$0xff]
    %v325 = vld [vmem:[%s3 + $0x58] sm:$0xff]
    %v326 = vld [vmem:[%s3 + $0x60] sm:$0xff]
    %v327 = vld [vmem:[%s3 + $0x68] sm:$0xff]
    %v328 = vld [vmem:[%s3 + $0x70] sm:$0xff]
    %v329 = vld [vmem:[%s3 + $0x78] sm:$0xff]
    %330 = vxpose.xlu0.b32.start [1/16] %v314, 128
    %331 = vxpose.xlu0.b32.cont [2/16] %v315, 128
    %332 = vxpose.xlu0.b32.cont [3/16] %v316, 128
    %333 = vxpose.xlu0.b32.cont [4/16] %v317, 128
    %334 = vxpose.xlu0.b32.cont [5/16] %v318, 128
    %335 = vxpose.xlu0.b32.cont [6/16] %v319, 128
    %336 = vxpose.xlu0.b32.cont [7/16] %v320, 128
    %337 = vxpose.xlu0.b32.cont [8/16] %v321, 128
    %338 = vxpose.xlu0.b32.cont [9/16] %v322, 128
    %339 = vxpose.xlu0.b32.cont [10/16] %v323, 128
    %340 = vxpose.xlu0.b32.cont [11/16] %v324, 128
    %341 = vxpose.xlu0.b32.cont [12/16] %v325, 128
    %342 = vxpose.xlu0.b32.cont [13/16] %v326, 128
    %343 = vxpose.xlu0.b32.cont [14/16] %v327, 128
    %344 = vxpose.xlu0.b32.cont [15/16] %v328, 128
    %345 = vxpose.xlu0.b32.end [16/16] %v329, 128
    %v346 = vpop.trf.xlu0
    %v347 = vpop.trf.xlu0
    %v348 = vpop.trf.xlu0
    %v349 = vpop.trf.xlu0
    %v350 = vpop.trf.xlu0
    %v351 = vpop.trf.xlu0
    %v352 = vpop.trf.xlu0
    %v353 = vpop.trf.xlu0
    %v354 = vpop.trf.xlu0
    %v355 = vpop.trf.xlu0
    %v356 = vpop.trf.xlu0
    %v357 = vpop.trf.xlu0
    %v358 = vpop.trf.xlu0
    %v359 = vpop.trf.xlu0
    %v360 = vpop.trf.xlu0
    %v361 = vpop.trf.xlu0
    %362 = vmatprep.subr.mxu0 0.0
    %363 = vmatpush1.xpose.msra.mxu0 %v218
    %364 = vmatprep.subr.mxu0 0.0
    %365 = vmatpush1.xpose.msra.mxu0 %v219
    %366 = vmatprep.subr.mxu0 0.0
    %367 = vmatpush1.xpose.msra.mxu0 %v220
    %368 = vmatprep.subr.mxu0 0.0
    %369 = vmatpush1.xpose.msra.mxu0 %v221
    %370 = vmatprep.subr.mxu0 0.0
    %371 = vmatpush1.xpose.msra.mxu0 %v222
    %372 = vmatprep.subr.mxu0 0.0
    %373 = vmatpush1.xpose.msra.mxu0 %v223
    %374 = vmatprep.subr.mxu0 0.0
    %375 = vmatpush1.xpose.msra.mxu0 %v224
    %376 = vmatprep.subr.mxu0 0.0
    %377 = vmatpush1.xpose.msra.mxu0 %v225
    %378 = vmatprep.subr.mxu0 0.0
    %379 = vmatpush1.xpose.msra.mxu0 %v226
    %380 = vmatprep.subr.mxu0 0.0
    %381 = vmatpush1.xpose.msra.mxu0 %v227
    %382 = vmatprep.subr.mxu0 0.0
    %383 = vmatpush1.xpose.msra.mxu0 %v228
    %384 = vmatprep.subr.mxu0 0.0
    %385 = vmatpush1.xpose.msra.mxu0 %v229
    %386 = vmatprep.subr.mxu0 0.0
    %387 = vmatpush1.xpose.msra.mxu0 %v230
    %388 = vmatprep.subr.mxu0 0.0
    %389 = vmatpush1.xpose.msra.mxu0 %v231
    %390 = vmatprep.subr.mxu0 0.0
    %391 = vmatpush1.xpose.msra.mxu0 %v232
    %392 = vmatprep.subr.mxu0 0.0
    %393 = vmatpush1.xpose.msra.mxu0 %v233
    %394 = vmatprep.subr.mxu0 0.0
    %395 = vmatpush1.xpose.msra.mxu0 0.0
    %396 = vmatprep.subr.mxu0 0.0
    %397 = vmatpush1.xpose.msra.mxu0 0.0
    %398 = vmatprep.subr.mxu0 0.0
    %399 = vmatpush1.xpose.msra.mxu0 0.0
    %400 = vmatprep.subr.mxu0 0.0
    %401 = vmatpush1.xpose.msra.mxu0 0.0
    %402 = vmatprep.subr.mxu0 0.0
    %403 = vmatpush1.xpose.msra.mxu0 0.0
    %404 = vmatprep.subr.mxu0 0.0
    %405 = vmatpush1.xpose.msra.mxu0 0.0
    %406 = vmatprep.subr.mxu0 0.0
    %407 = vmatpush1.xpose.msra.mxu0 0.0
    %408 = vmatprep.subr.mxu0 0.0
    %409 = vmatpush1.xpose.msra.mxu0 0.0
    %410 = vmatprep.subr.mxu0 0.0
    %411 = vmatpush1.xpose.msra.mxu0 0.0
    %412 = vmatprep.subr.mxu0 0.0
    %413 = vmatpush1.xpose.msra.mxu0 0.0
    %414 = vmatprep.subr.mxu0 0.0
    %415 = vmatpush1.xpose.msra.mxu0 0.0
    %416 = vmatprep.subr.mxu0 0.0
    %417 = vmatpush1.xpose.msra.mxu0 0.0
    %418 = vmatprep.subr.mxu0 0.0
    %419 = vmatpush1.xpose.msra.mxu0 0.0
    %420 = vmatprep.subr.mxu0 0.0
    %421 = vmatpush1.xpose.msra.mxu0 0.0
    %422 = vmatprep.subr.mxu0 0.0
    %423 = vmatpush1.xpose.msra.mxu0 0.0
    %424 = vmatprep.subr.mxu0 0.0
    %425 = vmatpush1.xpose.msra.mxu0 0.0
    %426 = vmatprep.mubr.f32.mxu0 0.0
    %427 = vmatmul.mubr.f32.gmra.mrb[0].mxu0 %v346
    %v428 = vpop.f32.mrb[0].mxu0
    %v429 = vadd.f32 0.0, %v428
    %v430 = vpop.f32.mrb[0].mxu0
    %431 = vdwg.mxu0
    %432 = vst [vmem:[#allocation4] sm:$0x3] %v429
    // Predicated region
    $region18: #{tpu_custom_call.1} parent=1 // pred_check
      _
    $region19: #{tpu_custom_call.1} parent=1 // pred_check_branch
      %434 = sbr.rel (0) target = $region21
    $region20: #{tpu_custom_call.1} parent=1 // pred_region
      %s436 = ssub.s32 1024, 1024
      %437 = vsyncadd [#allocation3], %s436
      %s438 = sshll.u32 [#allocation2], 4
      %s439 = int_to_ptr.vmem [resolvable:$true] %s438
      %444 = dma.vmem_to_hbm [thread:$0]  %s439, 1024, %s4, [#allocation3], 64, 64, 4
    $region21: #{tpu_custom_call.1} parent=1 // pred_fallthru
      _
    // Predicated region
    $region22: #{tpu_custom_call.1} parent=1 // pred_check
      _
    $region23: #{tpu_custom_call.1} parent=1 // pred_check_branch
      %446 = sbr.rel (0) target = $region25
    $region24: #{tpu_custom_call.1} parent=1 // pred_region
      %s448 = ssub.s32 32, 32
      %449 = vsyncadd [#allocation5], %s448
      %s451 = sshll.u32 [#allocation4], 4
      %s452 = int_to_ptr.vmem [resolvable:$true] %s451
      %454 = dma.vmem_to_hbm [thread:$0]  %s452, 32, %s5, [#allocation5]
    $region25: #{tpu_custom_call.1} parent=1 // pred_fallthru
      _
    // Predicated region
    $region26: #{tpu_custom_call.1} parent=1 // pred_check
      _
    $region27: #{tpu_custom_call.1} parent=1 // pred_check_branch
      %456 = sbr.rel (0) target = $region29
    $region28: #{tpu_custom_call.1} parent=1 // pred_region
      %457 = dma.done [#allocation3], 1024
    $region29: #{tpu_custom_call.1} parent=1 // pred_fallthru
      _
    // Predicated region
    $region30: #{tpu_custom_call.1} parent=1 // pred_check
      _
    $region31: #{tpu_custom_call.1} parent=1 // pred_check_branch
      %459 = sbr.rel (0) target = $region33
    $region32: #{tpu_custom_call.1} parent=1 // pred_region
      %460 = dma.done [#allocation5], 32
    $region33: #{tpu_custom_call.1} parent=1 // pred_fallthru
      _
    %461 = vsyncpa [#allocation3], 1
    %462 = vsyncpa [#allocation5], 1

</llo_original>
